<compile_context>
chip_gen: v7x
topology: tpu7x:2x2x1
jax: 0.10.0
libtpu: 0.0.40
codegen_flags: <defaults>
</compile_context>

<pallas_src>
import functools
import math

import jax
import jax.numpy as jnp
from jax.experimental import pallas as pl
from jax.experimental.pallas import tpu as pltpu


def _attention_body(q, k, v, o_ref, scale):
    # q, k, v: (Bblk, C, T) tiles; everything batched over Bblk heads.
    qs = q * scale
    ks = k * scale

    # Scores: contract the per-head channel dim; natural output order is (B,T,S).
    s = jnp.einsum('bct,bcs->bts', qs, ks,
                   preferred_element_type=jnp.float32)        # (B, T, T) f32

    # Numerically-stable softmax in f32 (matches th.softmax(weight.float(), -1)).
    # One divide per row, broadcast as a multiply over the TxT tile.
    s = s - jnp.max(s, axis=-1, keepdims=True)
    p = jnp.exp(s)
    inv_l = 1.0 / jnp.sum(p, axis=-1, keepdims=True)
    w = (p * inv_l).astype(v.dtype)                           # matches .type(weight.dtype)

    # Second matmul: operand order chosen so dot_general's natural output is (B,C,T).
    a = jnp.einsum('bcs,bts->bct', v, w,
                   preferred_element_type=jnp.float32)        # (B, C, T) f32
    o_ref[...] = a.astype(o_ref.dtype)


def _kernel_split(q_ref, k_ref, v_ref, o_ref, *, scale):
    _attention_body(q_ref[...], k_ref[...], v_ref[...], o_ref, scale)


def _kernel_fused(qkv_ref, o_ref, *, ch, scale):
    q = qkv_ref[:, 0 * ch:1 * ch, :]
    k = qkv_ref[:, 1 * ch:2 * ch, :]
    v = qkv_ref[:, 2 * ch:3 * ch, :]
    _attention_body(q, k, v, o_ref, scale)


def _largest_divisor_leq(n: int, cap: int) -> int:
    cap = max(1, min(n, cap))
    for d in range(cap, 0, -1):
        if n % d == 0:
            return d
    return 1


def qkv_attention_legacy(qkv: jnp.ndarray, n_heads: int) -> jnp.ndarray:
    """QKVAttentionLegacy.forward as a Pallas TPU kernel.

    qkv: [N, n_heads*3*C, T] -> [N, n_heads*C, T]
    """
    N, width, T = qkv.shape
    assert width % (3 * n_heads) == 0, "width must be divisible by 3*n_heads"
    ch = width // (3 * n_heads)
    NH = N * n_heads
    scale = 1.0 / math.sqrt(math.sqrt(ch))

    # Flatten heads into the leading (batched) axis; free reshape in the wrapper.
    qkv_r = qkv.reshape(NH, 3 * ch, T)

    # --- choose how many (batch*head) rows to process per grid step ----------
    itemsize = jnp.dtype(qkv.dtype).itemsize
    # Double-buffered input + output tiles, f32 scores/probs, cast weights.
    per_head_bytes = (2 * (3 * ch * T + ch * T) * itemsize
                      + 2 * T * T * 4 + T * T * itemsize)
    budget_bytes = 6 * 1024 * 1024                 # multi-MiB tile sweet spot
    cap = max(1, budget_bytes // max(1, per_head_bytes))
    if NH >= 2:
        cap = min(cap, max(1, NH // 2))            # keep >=2 grid steps (v7x: 2 TCs)
    b_blk = _largest_divisor_leq(NH, cap)
    grid = (NH // b_blk,)

    cost = pl.CostEstimate(
        flops=4 * NH * T * T * ch,                 # two batched T x C x T matmuls
        transcendentals=NH * T * T,                # exp in softmax
        bytes_accessed=(NH * 3 * ch * T + NH * ch * T) * itemsize,
    )
    cparams = pltpu.CompilerParams(
        dimension_semantics=("parallel",),
        vmem_limit_bytes=32 * 1024 * 1024,
    )
    out_shape = jax.ShapeDtypeStruct((NH, ch, T), qkv.dtype)
    out_spec = pl.BlockSpec((b_blk, ch, T), lambda b: (b, 0, 0))

    if ch % 8 == 0:
        # Separate q/k/v windows into the packed qkv array: sublane-aligned tiles,
        # no in-kernel slicing of the sublane axis.
        q_spec = pl.BlockSpec((b_blk, ch, T), lambda b: (b, 0, 0))
        k_spec = pl.BlockSpec((b_blk, ch, T), lambda b: (b, 1, 0))
        v_spec = pl.BlockSpec((b_blk, ch, T), lambda b: (b, 2, 0))
        out = pl.pallas_call(
            functools.partial(_kernel_split, scale=scale),
            out_shape=out_shape,
            grid=grid,
            in_specs=[q_spec, k_spec, v_spec],
            out_specs=out_spec,
            compiler_params=cparams,
            cost_estimate=cost,
        )(qkv_r, qkv_r, qkv_r)
    else:
        # Fallback: fused block whose dims equal the full trailing array dims.
        out = pl.pallas_call(
            functools.partial(_kernel_fused, ch=ch, scale=scale),
            out_shape=out_shape,
            grid=grid,
            in_specs=[pl.BlockSpec((b_blk, 3 * ch, T), lambda b: (b, 0, 0))],
            out_specs=out_spec,
            compiler_params=cparams,
            cost_estimate=cost,
        )(qkv_r)

    return out.reshape(N, n_heads * ch, T)


class QKVAttentionLegacy:
    """JAX/Pallas port of guided_diffusion.unet.QKVAttentionLegacy."""

    def __init__(self, n_heads: int):
        self.n_heads = n_heads

    def __call__(self, qkv: jnp.ndarray) -> jnp.ndarray:
        return qkv_attention_legacy(qkv, self.n_heads)


def _reference(qkv: jnp.ndarray, n_heads: int) -> jnp.ndarray:
    """Pure-JAX transcription of the PyTorch forward (for verification)."""
    N, width, T = qkv.shape
    ch = width // (3 * n_heads)
    q, k, v = jnp.split(qkv.reshape(N * n_heads, 3 * ch, T), 3, axis=1)
    scale = 1.0 / math.sqrt(math.sqrt(ch))
    w = jnp.einsum('bct,bcs->bts', q * scale, k * scale)
    w = jax.nn.softmax(w.astype(jnp.float32), axis=-1).astype(w.dtype)
    a = jnp.einsum('bts,bcs->bct', w, v)
    return a.reshape(N, -1, T)


if __name__ == "__main__":
    key = jax.random.PRNGKey(0)
    N, n_heads, ch, T = 2, 2, 16, 8
    width = n_heads * 3 * ch                      # 96
    qkv = jax.random.normal(key, (N, width, T), dtype=jnp.float32)

    attn = QKVAttentionLegacy(n_heads)
    y = attn(qkv)
    jax.block_until_ready(y)

    ref = _reference(qkv, n_heads)
    assert y.shape == (N, n_heads * ch, T), y.shape
    assert jnp.allclose(y, ref, atol=1e-5, rtol=1e-5), float(jnp.max(jnp.abs(y - ref)))

    print("KERNEL_OK")
</pallas_src>

<mosaic_0001>
module attributes {stable_mosaic.version = 11 : i64} {
  func.func @_kernel_split(%arg0: i32, %arg1: memref<2x16x8xf32, #tpu.memory_space<vmem>>, %arg2: memref<2x16x8xf32, #tpu.memory_space<vmem>>, %arg3: memref<2x16x8xf32, #tpu.memory_space<vmem>>, %arg4: memref<2x16x8xf32, #tpu.memory_space<vmem>>) attributes {dimension_semantics = [#tpu.dimension_semantics<parallel>], iteration_bounds = array<i64: 2>, scalar_prefetch = 0 : i64, scratch_operands = 0 : i64, tpu.core_type = #tpu.core_type<tc>, window_params = [{transform_indices = @transform_0, window_bounds = array<i64: 2, 16, 8>}, {transform_indices = @transform_1, window_bounds = array<i64: 2, 16, 8>}, {transform_indices = @transform_2, window_bounds = array<i64: 2, 16, 8>}, {transform_indices = @transform_3, window_bounds = array<i64: 2, 16, 8>}]} {
    %c0 = arith.constant 0 : index
    %c0_0 = arith.constant 0 : index
    %c0_1 = arith.constant 0 : index
    %0 = vector.load %arg1[%c0, %c0_0, %c0_1] : memref<2x16x8xf32, #tpu.memory_space<vmem>>, vector<2x16x8xf32>
    %c0_2 = arith.constant 0 : index
    %c0_3 = arith.constant 0 : index
    %c0_4 = arith.constant 0 : index
    %1 = vector.load %arg2[%c0_2, %c0_3, %c0_4] : memref<2x16x8xf32, #tpu.memory_space<vmem>>, vector<2x16x8xf32>
    %c0_5 = arith.constant 0 : index
    %c0_6 = arith.constant 0 : index
    %c0_7 = arith.constant 0 : index
    %2 = vector.load %arg3[%c0_5, %c0_6, %c0_7] : memref<2x16x8xf32, #tpu.memory_space<vmem>>, vector<2x16x8xf32>
    %cst = arith.constant 5.000000e-01 : f32
    %3 = vector.broadcast %cst : f32 to vector<2x16x8xf32>
    %4 = arith.mulf %0, %3 : vector<2x16x8xf32>
    %cst_8 = arith.constant 5.000000e-01 : f32
    %5 = vector.broadcast %cst_8 : f32 to vector<2x16x8xf32>
    %6 = arith.mulf %1, %5 : vector<2x16x8xf32>
    "tpu.trace_start"() <{level = 10 : i32, message = "bct,bcs->bts"}> : () -> ()
    %cst_9 = arith.constant dense<0.000000e+00> : vector<2x8x8xf32>
    %7 = tpu.matmul %4, %6, %cst_9 {dimension_numbers = #tpu.dot_dimension_numbers<[1], [1], [2], [2], [0, 0, 0, 2, 1, 2], [0], [0]>} : vector<2x16x8xf32>, vector<2x16x8xf32>, vector<2x8x8xf32> -> vector<2x8x8xf32>
    "tpu.trace_stop"() : () -> ()
    %cst_10 = arith.constant dense<0xFF800000> : vector<2x8xf32>
    %8 = vector.multi_reduction <maximumf>, %7, %cst_10 [2] : vector<2x8x8xf32> to vector<2x8xf32>
    %9 = vector.shape_cast %8 : vector<2x8xf32> to vector<2x8x1xf32>
    %10 = vector.broadcast %9 : vector<2x8x1xf32> to vector<2x8x8xf32>
    %11 = arith.subf %7, %10 : vector<2x8x8xf32>
    %12 = math.exp %11 : vector<2x8x8xf32>
    %cst_11 = arith.constant dense<0.000000e+00> : vector<2x8xf32>
    %13 = vector.multi_reduction <add>, %12, %cst_11 [2] : vector<2x8x8xf32> to vector<2x8xf32>
    %14 = vector.shape_cast %13 : vector<2x8xf32> to vector<2x8x1xf32>
    %cst_12 = arith.constant 1.000000e+00 : f32
    %15 = vector.broadcast %cst_12 : f32 to vector<2x8x1xf32>
    %16 = arith.divf %15, %14 : vector<2x8x1xf32>
    %17 = vector.broadcast %16 : vector<2x8x1xf32> to vector<2x8x8xf32>
    %18 = arith.mulf %12, %17 : vector<2x8x8xf32>
    "tpu.trace_start"() <{level = 10 : i32, message = "bcs,bts->bct"}> : () -> ()
    %cst_13 = arith.constant dense<0.000000e+00> : vector<2x16x8xf32>
    %19 = tpu.matmul %2, %18, %cst_13 {dimension_numbers = #tpu.dot_dimension_numbers<[2], [2], [1], [1], [0, 0, 0, 1, 1, 1], [0], [0]>} : vector<2x16x8xf32>, vector<2x8x8xf32>, vector<2x16x8xf32> -> vector<2x16x8xf32>
    "tpu.trace_stop"() : () -> ()
    %c0_14 = arith.constant 0 : index
    %c0_15 = arith.constant 0 : index
    %c0_16 = arith.constant 0 : index
    %20 = vector.load %arg4[%c0_14, %c0_15, %c0_16] : memref<2x16x8xf32, #tpu.memory_space<vmem>>, vector<2x16x8xf32>
    tpu.vector_store %arg4[%c0_14, %c0_15, %c0_16], %19 {strides = array<i32>} : memref<2x16x8xf32, #tpu.memory_space<vmem>>, vector<2x16x8xf32>,
    return
  }
  func.func @transform_0(%arg0: i32) -> (i32, i32, i32) {
    %c0_i32 = arith.constant 0 : i32
    %c0_i32_0 = arith.constant 0 : i32
    %c0_i32_1 = arith.constant 0 : i32
    return %arg0, %c0_i32, %c0_i32_0 : i32, i32, i32
  }
  func.func @transform_1(%arg0: i32) -> (i32, i32, i32) {
    %c1_i32 = arith.constant 1 : i32
    %c0_i32 = arith.constant 0 : i32
    %c0_i32_0 = arith.constant 0 : i32
    return %arg0, %c1_i32, %c0_i32 : i32, i32, i32
  }
  func.func @transform_2(%arg0: i32) -> (i32, i32, i32) {
    %c2_i32 = arith.constant 2 : i32
    %c0_i32 = arith.constant 0 : i32
    %c0_i32_0 = arith.constant 0 : i32
    return %arg0, %c2_i32, %c0_i32 : i32, i32, i32
  }
  func.func @transform_3(%arg0: i32) -> (i32, i32, i32) {
    %c0_i32 = arith.constant 0 : i32
    %c0_i32_0 = arith.constant 0 : i32
    %c0_i32_1 = arith.constant 0 : i32
    return %arg0, %c0_i32, %c0_i32_0 : i32, i32, i32
  }
}

</mosaic_0001>

<llo_original>
// kernel: tpu_custom_call.1
$region0: #{tpu_custom_call.1}
  #allocation0 [shape = 'u32[]', space=smem, size = 0x4, offset = 0x4, fixed_abs, tag = 'smem constant byte address 0x4 - core index']
  #allocation1 [shape = 'u32[144,128]{1,0:T(1,128)}', space=vmem, size = 0x12000, scoped, tag = 'internal scratch']
  %s0 = inlined_call_operand.vmem [shape: f32[4,48,8], index: 0, kind: input, shape index: {}]
  %s1 = inlined_call_operand.vmem [shape: f32[4,48,8], index: 1, kind: input, shape index: {}]
  %s2 = inlined_call_operand.vmem [shape: f32[4,48,8], index: 2, kind: input, shape index: {}]
  %s3 = inlined_call_operand.vmem [shape: f32[4,16,8], index: 3, kind: output, shape index: {}]
  %s4 = sld [smem:[#allocation0]]
  $region159: #{tpu_custom_call.1} parent=0
    _
  %s6 = ssub.s32 1, %s4
  %s7 = scalar_select 0, %s6, %s4
  $region1: #{tpu_custom_call.1} parent=0
    #allocation2 [shape = 'u8[32768]{0}', space=vmem, size = 0x8000, scoped, tag = 'input window, operand 0']
    #allocation3 [shape = 'u8[32768]{0}', space=vmem, size = 0x8000, scoped, tag = 'input window, operand 1']
    #allocation4 [shape = 'u8[32768]{0}', space=vmem, size = 0x8000, scoped, tag = 'input window, operand 2']
    loop: start=0, step=1, limit=4
    $region2: #{tpu_custom_call.1} parent=1 // loop_pre_header
      _
    $region3: #{tpu_custom_call.1} parent=1 // loop_header
      %s9 = sphi 0, %s13
      %p10 = scmp.ge.s32.totalorder %s9, 4
      %s19 = sphi 0, %s21
      %s22 = sphi 0, %s19
      %s23 = sphi 0, %s22
      %s39 = sphi 0, %s23
      %s45 = sphi 0, %s47
      %s48 = sphi 0, %s45
      %s49 = sphi 0, %s48
      %s65 = sphi 0, %s49
      %s71 = sphi 0, %s73
      %s74 = sphi 0, %s71
      %s75 = sphi 0, %s74
      %s91 = sphi 0, %s75
      %s97 = sphi 0, %s99
      %s100 = sphi 0, %s97
      %s101 = sphi 0, %s100
      %s117 = sphi 0, %s101
    $region4: #{tpu_custom_call.1} parent=1 // loop_header_branch
      %12 = sbr.rel (%p10) target = $region8
    $region5: #{tpu_custom_call.1} parent=1 // loop_body
      %s14 = ssub.s32 %s9, 1
      %s15 = ssub.s32 %s9, 2
      %s16 = sadd.s32 %s9, 1
      %s17 = ssub.s32 %s9, %s16
      %p18 = scmp.eq.s32.totalorder %s17, 0
      %s20 = sadd.s32 %s19, 1
      %s21 = scalar_select %p18, %s19, %s20
      %p24 = pneg %p18
      %p25 = scmp.eq.s32.totalorder %s9, 1
      %p26 = por %p24, %p25
      %p27 = scmp.ne.s32.totalorder %s19, %s22
      %p28 = scmp.eq.s32.totalorder %s9, 0
      %p29 = por %p27, %p28
      %p30 = scmp.ne.s32.totalorder %s19, %s22
      %p31 = scmp.eq.s32.totalorder %s14, 1
      %p32 = por %p30, %p31
      %p33 = scmp.ne.s32.totalorder %s22, %s23
      %p34 = scmp.eq.s32.totalorder %s14, 0
      %p35 = por %p33, %p34
      %p36 = scmp.ne.s32.totalorder %s22, %s23
      %p37 = scmp.eq.s32.totalorder %s15, 1
      %p38 = por %p36, %p37
      %p40 = scmp.ne.s32.totalorder %s23, %s39
      %p41 = scmp.eq.s32.totalorder %s15, 0
      %p42 = por %p40, %p41
      %s43 = ssub.s32 %s9, %s16
      %p44 = scmp.eq.s32.totalorder %s43, 0
      %s46 = sadd.s32 %s45, 1
      %s47 = scalar_select %p44, %s45, %s46
      %p50 = pneg %p44
      %p51 = scmp.eq.s32.totalorder %s9, 1
      %p52 = por %p50, %p51
      %p53 = scmp.ne.s32.totalorder %s45, %s48
      %p54 = scmp.eq.s32.totalorder %s9, 0
      %p55 = por %p53, %p54
      %p56 = scmp.ne.s32.totalorder %s45, %s48
      %p57 = scmp.eq.s32.totalorder %s14, 1
      %p58 = por %p56, %p57
      %p59 = scmp.ne.s32.totalorder %s48, %s49
      %p60 = scmp.eq.s32.totalorder %s14, 0
      %p61 = por %p59, %p60
      %p62 = scmp.ne.s32.totalorder %s48, %s49
      %p63 = scmp.eq.s32.totalorder %s15, 1
      %p64 = por %p62, %p63
      %p66 = scmp.ne.s32.totalorder %s49, %s65
      %p67 = scmp.eq.s32.totalorder %s15, 0
      %p68 = por %p66, %p67
      %s69 = ssub.s32 %s9, %s16
      %p70 = scmp.eq.s32.totalorder %s69, 0
      %s72 = sadd.s32 %s71, 1
      %s73 = scalar_select %p70, %s71, %s72
      %p76 = pneg %p70
      %p77 = scmp.eq.s32.totalorder %s9, 1
      %p78 = por %p76, %p77
      %p79 = scmp.ne.s32.totalorder %s71, %s74
      %p80 = scmp.eq.s32.totalorder %s9, 0
      %p81 = por %p79, %p80
      %p82 = scmp.ne.s32.totalorder %s71, %s74
      %p83 = scmp.eq.s32.totalorder %s14, 1
      %p84 = por %p82, %p83
      %p85 = scmp.ne.s32.totalorder %s74, %s75
      %p86 = scmp.eq.s32.totalorder %s14, 0
      %p87 = por %p85, %p86
      %p88 = scmp.ne.s32.totalorder %s74, %s75
      %p89 = scmp.eq.s32.totalorder %s15, 1
      %p90 = por %p88, %p89
      %p92 = scmp.ne.s32.totalorder %s75, %s91
      %p93 = scmp.eq.s32.totalorder %s15, 0
      %p94 = por %p92, %p93
      %s95 = ssub.s32 %s9, %s16
      %p96 = scmp.eq.s32.totalorder %s95, 0
      %s98 = sadd.s32 %s97, 1
      %s99 = scalar_select %p96, %s97, %s98
      %p102 = pneg %p96
      %p103 = scmp.eq.s32.totalorder %s9, 1
      %p104 = por %p102, %p103
      %p105 = scmp.ne.s32.totalorder %s97, %s100
      %p106 = scmp.eq.s32.totalorder %s9, 0
      %p107 = por %p105, %p106
      %p108 = scmp.ne.s32.totalorder %s97, %s100
      %p109 = scmp.eq.s32.totalorder %s14, 1
      %p110 = por %p108, %p109
      %p111 = scmp.ne.s32.totalorder %s100, %s101
      %p112 = scmp.eq.s32.totalorder %s14, 0
      %p113 = por %p111, %p112
      %p114 = scmp.ne.s32.totalorder %s100, %s101
      %p115 = scmp.eq.s32.totalorder %s15, 1
      %p116 = por %p114, %p115
      %p118 = scmp.ne.s32.totalorder %s101, %s117
      %p119 = scmp.eq.s32.totalorder %s15, 0
      %p120 = por %p118, %p119
      %p121 = scmp.le.s32.totalorder 1, %s9
      %p122 = scmp.lt.s32.totalorder %s9, 3
      %p123 = pnand %p121, %p122
      %p124 = pneg %p123
      // Predicated region
      $region9: #{tpu_custom_call.1} parent=5 // pred_check
        _
      $region10: #{tpu_custom_call.1} parent=5 // pred_check_branch
        %126 = sbr.rel (%p123) target = $region12
      $region11: #{tpu_custom_call.1} parent=5 // pred_region
        %s127 = ssub.s32 %s9, 1
      $region12: #{tpu_custom_call.1} parent=5 // pred_fallthru
        _
      %p128 = scmp.lt.s32.totalorder %s9, 2
      // Predicated region
      $region13: #{tpu_custom_call.1} parent=5 // pred_check
        %p129 = pneg %p128
      $region14: #{tpu_custom_call.1} parent=5 // pred_check_branch
        %131 = sbr.rel (%p129) target = $region16
      $region15: #{tpu_custom_call.1} parent=5 // pred_region
        // Predicated region
        $region17: #{tpu_custom_call.1} parent=15 // pred_check
          %p132 = pneg %p29
        $region18: #{tpu_custom_call.1} parent=15 // pred_check_branch
          %134 = sbr.rel (%p132) target = $region20
        $region19: #{tpu_custom_call.1} parent=15 // pred_region
          %s135 = sand.u32 %s19, 1
          %s136 = sand.u32 %s19, 1
          %s137 = smul.addr %s136, 32
          %s138 = scalar_lea.vmem [#allocation2], %s137
          %s139 = smul.u32 2, %s9
          %s140 = smul.addr %s139, 6
          %s141 = smul.addr %s140, 8
          %s142 = scalar_lea.vmem %s0, %s141
          // Predicated region
          $region21: #{tpu_custom_call.1} parent=19 // pred_check
            _
          $region22: #{tpu_custom_call.1} parent=19 // pred_check_branch
            %144 = sbr.rel (0) target = $region24
          $region23: #{tpu_custom_call.1} parent=19 // pred_region
            // Predicated region
            $region25: #{tpu_custom_call.1} parent=23 // pred_check
              _
            $region26: #{tpu_custom_call.1} parent=23 // pred_check_branch
              %146 = sbr.rel (0) target = $region28
            $region27: #{tpu_custom_call.1} parent=23 // pred_region
              // Predicated region
              $region40: #{tpu_custom_call.1} parent=27 // pred_check
                _
              $region41: #{tpu_custom_call.1} parent=27 // pred_check_branch
                %167 = sbr.rel (0) target = $region43
              $region42: #{tpu_custom_call.1} parent=27 // pred_region
                loop: start=0, step=1, limit=1
                $region44: #{tpu_custom_call.1} parent=42 // loop_pre_header
                  _
                $region45: #{tpu_custom_call.1} parent=42 // loop_header
                  %s169 = sphi 0, %s173
                  %p170 = scmp.ge.s32.totalorder %s169, 1
                  %s174 = sphi %s142, %s142
                  %s175 = sphi %s138, %s138
                $region46: #{tpu_custom_call.1} parent=42 // loop_header_branch
                  %172 = sbr.rel (%p170) target = $region50
                $region47: #{tpu_custom_call.1} parent=42 // loop_body
                  %v176 = vld [vmem:[%s174] sm:$0xff]
                  %177 = vst [vmem:[%s175] sm:$0xff] %v176
                  %v178 = vld [vmem:[%s174 + $0x8] sm:$0xff]
                  %179 = vst [vmem:[%s175 + $0x8] sm:$0xff] %v178
                  %v180 = vld [vmem:[%s174 + $0x30] sm:$0xff]
                  %181 = vst [vmem:[%s175 + $0x10] sm:$0xff] %v180
                  %v182 = vld [vmem:[%s174 + $0x38] sm:$0xff]
                  %183 = vst [vmem:[%s175 + $0x18] sm:$0xff] %v182
                $region48: #{tpu_custom_call.1} parent=42 // loop_footer
                  %s173 = sadd.s32 1, %s169
                $region49: #{tpu_custom_call.1} parent=42 // loop_footer_branch
                  %168 = sbr.rel target = $region45
                $region50: #{tpu_custom_call.1} parent=42 // loop_exit
                  _
              $region43: #{tpu_custom_call.1} parent=27 // pred_fallthru
                _
              // Predicated region
              $region51: #{tpu_custom_call.1} parent=27 // pred_check
                _
              $region52: #{tpu_custom_call.1} parent=27 // pred_check_branch
                %185 = sbr.rel target = $region54
              $region53: #{tpu_custom_call.1} parent=27 // pred_region
                _
              $region54: #{tpu_custom_call.1} parent=27 // pred_fallthru
                _
            $region28: #{tpu_custom_call.1} parent=23 // pred_fallthru
              _
            // Predicated region
            $region29: #{tpu_custom_call.1} parent=23 // pred_check
              _
            $region30: #{tpu_custom_call.1} parent=23 // pred_check_branch
              %148 = sbr.rel target = $region32
            $region31: #{tpu_custom_call.1} parent=23 // pred_region
              loop: start=0, step=1, limit=1
              $region33: #{tpu_custom_call.1} parent=31 // loop_pre_header
                _
              $region34: #{tpu_custom_call.1} parent=31 // loop_header
                %s151 = sphi 0, %s155
                %p152 = scmp.ge.s32.totalorder %s151, 1
                %s156 = sphi %s142, %s142
                %s157 = sphi %s138, %s138
              $region35: #{tpu_custom_call.1} parent=31 // loop_header_branch
                %154 = sbr.rel (%p152) target = $region39
              $region36: #{tpu_custom_call.1} parent=31 // loop_body
                %v158 = vld [vmem:[%s156] sm:$0xff]
                %159 = vst [vmem:[%s157] sm:$0xff] %v158
                %v160 = vld [vmem:[%s156 + $0x8] sm:$0xff]
                %161 = vst [vmem:[%s157 + $0x8] sm:$0xff] %v160
                %v162 = vld [vmem:[%s156 + $0x30] sm:$0xff]
                %163 = vst [vmem:[%s157 + $0x10] sm:$0xff] %v162
                %v164 = vld [vmem:[%s156 + $0x38] sm:$0xff]
                %165 = vst [vmem:[%s157 + $0x18] sm:$0xff] %v164
              $region37: #{tpu_custom_call.1} parent=31 // loop_footer
                %s155 = sadd.s32 1, %s151
              $region38: #{tpu_custom_call.1} parent=31 // loop_footer_branch
                %150 = sbr.rel target = $region34
              $region39: #{tpu_custom_call.1} parent=31 // loop_exit
                _
            $region32: #{tpu_custom_call.1} parent=23 // pred_fallthru
              _
          $region24: #{tpu_custom_call.1} parent=19 // pred_fallthru
            _
          %186 = vnop
        $region20: #{tpu_custom_call.1} parent=15 // pred_fallthru
          _
        // Predicated region
        $region55: #{tpu_custom_call.1} parent=15 // pred_check
          %p187 = pneg %p55
        $region56: #{tpu_custom_call.1} parent=15 // pred_check_branch
          %189 = sbr.rel (%p187) target = $region58
        $region57: #{tpu_custom_call.1} parent=15 // pred_region
          %s190 = sand.u32 %s45, 1
          %s191 = sand.u32 %s45, 1
          %s192 = smul.addr %s191, 32
          %s193 = scalar_lea.vmem [#allocation3], %s192
          %s194 = smul.u32 2, %s9
          %s195 = smul.addr %s194, 6
          %s196 = sadd.s32 2, %s195
          %s197 = smul.addr %s196, 8
          %s198 = scalar_lea.vmem %s1, %s197
          // Predicated region
          $region59: #{tpu_custom_call.1} parent=57 // pred_check
            _
          $region60: #{tpu_custom_call.1} parent=57 // pred_check_branch
            %200 = sbr.rel (0) target = $region62
          $region61: #{tpu_custom_call.1} parent=57 // pred_region
            // Predicated region
            $region63: #{tpu_custom_call.1} parent=61 // pred_check
              _
            $region64: #{tpu_custom_call.1} parent=61 // pred_check_branch
              %202 = sbr.rel (0) target = $region66
            $region65: #{tpu_custom_call.1} parent=61 // pred_region
              // Predicated region
              $region78: #{tpu_custom_call.1} parent=65 // pred_check
                _
              $region79: #{tpu_custom_call.1} parent=65 // pred_check_branch
                %223 = sbr.rel (0) target = $region81
              $region80: #{tpu_custom_call.1} parent=65 // pred_region
                loop: start=0, step=1, limit=1
                $region82: #{tpu_custom_call.1} parent=80 // loop_pre_header
                  _
                $region83: #{tpu_custom_call.1} parent=80 // loop_header
                  %s225 = sphi 0, %s229
                  %p226 = scmp.ge.s32.totalorder %s225, 1
                  %s230 = sphi %s198, %s198
                  %s231 = sphi %s193, %s193
                $region84: #{tpu_custom_call.1} parent=80 // loop_header_branch
                  %228 = sbr.rel (%p226) target = $region88
                $region85: #{tpu_custom_call.1} parent=80 // loop_body
                  %v232 = vld [vmem:[%s230] sm:$0xff]
                  %233 = vst [vmem:[%s231] sm:$0xff] %v232
                  %v234 = vld [vmem:[%s230 + $0x8] sm:$0xff]
                  %235 = vst [vmem:[%s231 + $0x8] sm:$0xff] %v234
                  %v236 = vld [vmem:[%s230 + $0x30] sm:$0xff]
                  %237 = vst [vmem:[%s231 + $0x10] sm:$0xff] %v236
                  %v238 = vld [vmem:[%s230 + $0x38] sm:$0xff]
                  %239 = vst [vmem:[%s231 + $0x18] sm:$0xff] %v238
                $region86: #{tpu_custom_call.1} parent=80 // loop_footer
                  %s229 = sadd.s32 1, %s225
                $region87: #{tpu_custom_call.1} parent=80 // loop_footer_branch
                  %224 = sbr.rel target = $region83
                $region88: #{tpu_custom_call.1} parent=80 // loop_exit
                  _
              $region81: #{tpu_custom_call.1} parent=65 // pred_fallthru
                _
              // Predicated region
              $region89: #{tpu_custom_call.1} parent=65 // pred_check
                _
              $region90: #{tpu_custom_call.1} parent=65 // pred_check_branch
                %241 = sbr.rel target = $region92
              $region91: #{tpu_custom_call.1} parent=65 // pred_region
                _
              $region92: #{tpu_custom_call.1} parent=65 // pred_fallthru
                _
            $region66: #{tpu_custom_call.1} parent=61 // pred_fallthru
              _
            // Predicated region
            $region67: #{tpu_custom_call.1} parent=61 // pred_check
              _
            $region68: #{tpu_custom_call.1} parent=61 // pred_check_branch
              %204 = sbr.rel target = $region70
            $region69: #{tpu_custom_call.1} parent=61 // pred_region
              loop: start=0, step=1, limit=1
              $region71: #{tpu_custom_call.1} parent=69 // loop_pre_header
                _
              $region72: #{tpu_custom_call.1} parent=69 // loop_header
                %s207 = sphi 0, %s211
                %p208 = scmp.ge.s32.totalorder %s207, 1
                %s212 = sphi %s198, %s198
                %s213 = sphi %s193, %s193
              $region73: #{tpu_custom_call.1} parent=69 // loop_header_branch
                %210 = sbr.rel (%p208) target = $region77
              $region74: #{tpu_custom_call.1} parent=69 // loop_body
                %v214 = vld [vmem:[%s212] sm:$0xff]
                %215 = vst [vmem:[%s213] sm:$0xff] %v214
                %v216 = vld [vmem:[%s212 + $0x8] sm:$0xff]
                %217 = vst [vmem:[%s213 + $0x8] sm:$0xff] %v216
                %v218 = vld [vmem:[%s212 + $0x30] sm:$0xff]
                %219 = vst [vmem:[%s213 + $0x10] sm:$0xff] %v218
                %v220 = vld [vmem:[%s212 + $0x38] sm:$0xff]
                %221 = vst [vmem:[%s213 + $0x18] sm:$0xff] %v220
              $region75: #{tpu_custom_call.1} parent=69 // loop_footer
                %s211 = sadd.s32 1, %s207
              $region76: #{tpu_custom_call.1} parent=69 // loop_footer_branch
                %206 = sbr.rel target = $region72
              $region77: #{tpu_custom_call.1} parent=69 // loop_exit
                _
            $region70: #{tpu_custom_call.1} parent=61 // pred_fallthru
              _
          $region62: #{tpu_custom_call.1} parent=57 // pred_fallthru
            _
          %242 = vnop
        $region58: #{tpu_custom_call.1} parent=15 // pred_fallthru
          _
        // Predicated region
        $region93: #{tpu_custom_call.1} parent=15 // pred_check
          %p243 = pneg %p81
        $region94: #{tpu_custom_call.1} parent=15 // pred_check_branch
          %245 = sbr.rel (%p243) target = $region96
        $region95: #{tpu_custom_call.1} parent=15 // pred_region
          %s246 = sand.u32 %s71, 1
          %s247 = sand.u32 %s71, 1
          %s248 = smul.addr %s247, 32
          %s249 = scalar_lea.vmem [#allocation4], %s248
          %s250 = smul.u32 2, %s9
          %s251 = smul.addr %s250, 6
          %s252 = sadd.s32 4, %s251
          %s253 = smul.addr %s252, 8
          %s254 = scalar_lea.vmem %s2, %s253
          // Predicated region
          $region97: #{tpu_custom_call.1} parent=95 // pred_check
            _
          $region98: #{tpu_custom_call.1} parent=95 // pred_check_branch
            %256 = sbr.rel (0) target = $region100
          $region99: #{tpu_custom_call.1} parent=95 // pred_region
            // Predicated region
            $region101: #{tpu_custom_call.1} parent=99 // pred_check
              _
            $region102: #{tpu_custom_call.1} parent=99 // pred_check_branch
              %258 = sbr.rel (0) target = $region104
            $region103: #{tpu_custom_call.1} parent=99 // pred_region
              // Predicated region
              $region116: #{tpu_custom_call.1} parent=103 // pred_check
                _
              $region117: #{tpu_custom_call.1} parent=103 // pred_check_branch
                %279 = sbr.rel (0) target = $region119
              $region118: #{tpu_custom_call.1} parent=103 // pred_region
                loop: start=0, step=1, limit=1
                $region120: #{tpu_custom_call.1} parent=118 // loop_pre_header
                  _
                $region121: #{tpu_custom_call.1} parent=118 // loop_header
                  %s281 = sphi 0, %s285
                  %p282 = scmp.ge.s32.totalorder %s281, 1
                  %s286 = sphi %s254, %s254
                  %s287 = sphi %s249, %s249
                $region122: #{tpu_custom_call.1} parent=118 // loop_header_branch
                  %284 = sbr.rel (%p282) target = $region126
                $region123: #{tpu_custom_call.1} parent=118 // loop_body
                  %v288 = vld [vmem:[%s286] sm:$0xff]
                  %289 = vst [vmem:[%s287] sm:$0xff] %v288
                  %v290 = vld [vmem:[%s286 + $0x8] sm:$0xff]
                  %291 = vst [vmem:[%s287 + $0x8] sm:$0xff] %v290
                  %v292 = vld [vmem:[%s286 + $0x30] sm:$0xff]
                  %293 = vst [vmem:[%s287 + $0x10] sm:$0xff] %v292
                  %v294 = vld [vmem:[%s286 + $0x38] sm:$0xff]
                  %295 = vst [vmem:[%s287 + $0x18] sm:$0xff] %v294
                $region124: #{tpu_custom_call.1} parent=118 // loop_footer
                  %s285 = sadd.s32 1, %s281
                $region125: #{tpu_custom_call.1} parent=118 // loop_footer_branch
                  %280 = sbr.rel target = $region121
                $region126: #{tpu_custom_call.1} parent=118 // loop_exit
                  _
              $region119: #{tpu_custom_call.1} parent=103 // pred_fallthru
                _
              // Predicated region
              $region127: #{tpu_custom_call.1} parent=103 // pred_check
                _
              $region128: #{tpu_custom_call.1} parent=103 // pred_check_branch
                %297 = sbr.rel target = $region130
              $region129: #{tpu_custom_call.1} parent=103 // pred_region
                _
              $region130: #{tpu_custom_call.1} parent=103 // pred_fallthru
                _
            $region104: #{tpu_custom_call.1} parent=99 // pred_fallthru
              _
            // Predicated region
            $region105: #{tpu_custom_call.1} parent=99 // pred_check
              _
            $region106: #{tpu_custom_call.1} parent=99 // pred_check_branch
              %260 = sbr.rel target = $region108
            $region107: #{tpu_custom_call.1} parent=99 // pred_region
              loop: start=0, step=1, limit=1
              $region109: #{tpu_custom_call.1} parent=107 // loop_pre_header
                _
              $region110: #{tpu_custom_call.1} parent=107 // loop_header
                %s263 = sphi 0, %s267
                %p264 = scmp.ge.s32.totalorder %s263, 1
                %s268 = sphi %s254, %s254
                %s269 = sphi %s249, %s249
              $region111: #{tpu_custom_call.1} parent=107 // loop_header_branch
                %266 = sbr.rel (%p264) target = $region115
              $region112: #{tpu_custom_call.1} parent=107 // loop_body
                %v270 = vld [vmem:[%s268] sm:$0xff]
                %271 = vst [vmem:[%s269] sm:$0xff] %v270
                %v272 = vld [vmem:[%s268 + $0x8] sm:$0xff]
                %273 = vst [vmem:[%s269 + $0x8] sm:$0xff] %v272
                %v274 = vld [vmem:[%s268 + $0x30] sm:$0xff]
                %275 = vst [vmem:[%s269 + $0x10] sm:$0xff] %v274
                %v276 = vld [vmem:[%s268 + $0x38] sm:$0xff]
                %277 = vst [vmem:[%s269 + $0x18] sm:$0xff] %v276
              $region113: #{tpu_custom_call.1} parent=107 // loop_footer
                %s267 = sadd.s32 1, %s263
              $region114: #{tpu_custom_call.1} parent=107 // loop_footer_branch
                %262 = sbr.rel target = $region110
              $region115: #{tpu_custom_call.1} parent=107 // loop_exit
                _
            $region108: #{tpu_custom_call.1} parent=99 // pred_fallthru
              _
          $region100: #{tpu_custom_call.1} parent=95 // pred_fallthru
            _
          %298 = vnop
        $region96: #{tpu_custom_call.1} parent=15 // pred_fallthru
          _
      $region16: #{tpu_custom_call.1} parent=5 // pred_fallthru
        _
      %p299 = scmp.le.s32.totalorder 1, %s9
      %p300 = scmp.lt.s32.totalorder %s9, 3
      %p301 = pnand %p299, %p300
      %p302 = pneg %p301
      // Predicated region
      $region131: #{tpu_custom_call.1} parent=5 // pred_check
        _
      $region132: #{tpu_custom_call.1} parent=5 // pred_check_branch
        %304 = sbr.rel (%p301) target = $region134
      $region133: #{tpu_custom_call.1} parent=5 // pred_region
        %s305 = ssub.s32 %s9, 1
        %s306 = sand.u32 %s22, 1
        %s307 = sand.u32 %s22, 1
        %s308 = smul.addr %s307, 32
        %s309 = scalar_lea.vmem [#allocation2], %s308
        // Predicated region
        $region135: #{tpu_custom_call.1} parent=133 // pred_check
          %p310 = pneg %p35
        $region136: #{tpu_custom_call.1} parent=133 // pred_check_branch
          %312 = sbr.rel (%p310) target = $region138
        $region137: #{tpu_custom_call.1} parent=133 // pred_region
          _
        $region138: #{tpu_custom_call.1} parent=133 // pred_fallthru
          _
        %s313 = sand.u32 %s48, 1
        %s314 = sand.u32 %s48, 1
        %s315 = smul.addr %s314, 32
        %s316 = scalar_lea.vmem [#allocation3], %s315
        // Predicated region
        $region139: #{tpu_custom_call.1} parent=133 // pred_check
          %p317 = pneg %p61
        $region140: #{tpu_custom_call.1} parent=133 // pred_check_branch
          %319 = sbr.rel (%p317) target = $region142
        $region141: #{tpu_custom_call.1} parent=133 // pred_region
          _
        $region142: #{tpu_custom_call.1} parent=133 // pred_fallthru
          _
        %s320 = sand.u32 %s74, 1
        %s321 = sand.u32 %s74, 1
        %s322 = smul.addr %s321, 32
        %s323 = scalar_lea.vmem [#allocation4], %s322
        // Predicated region
        $region143: #{tpu_custom_call.1} parent=133 // pred_check
          %p324 = pneg %p87
        $region144: #{tpu_custom_call.1} parent=133 // pred_check_branch
          %326 = sbr.rel (%p324) target = $region146
        $region145: #{tpu_custom_call.1} parent=133 // pred_region
          _
        $region146: #{tpu_custom_call.1} parent=133 // pred_fallthru
          _
        %s327 = sand.u32 %s22, 1
        %s328 = sand.u32 %s22, 1
        %s329 = smul.addr %s328, 32
        %s330 = scalar_lea.vmem [#allocation2], %s329
        %p331 = pneg %p35
        %p332 = pneg %p32
        %s333 = sand.u32 %s48, 1
        %s334 = sand.u32 %s48, 1
        %s335 = smul.addr %s334, 32
        %s336 = scalar_lea.vmem [#allocation3], %s335
        %p337 = pneg %p61
        %p338 = pneg %p58
        %s339 = sand.u32 %s74, 1
        %s340 = sand.u32 %s74, 1
        %s341 = smul.addr %s340, 32
        %s342 = scalar_lea.vmem [#allocation4], %s341
        %p343 = pneg %p87
        %p344 = pneg %p84
        %p345 = pneg %p113
        %p346 = pneg %p110
        %s347 = smul.u32 2, %s14
        %p348 = scmp.lt.s32.totalorder %s347, 3
        %s349 = scalar_select %p348, %s347, 3
        %s350 = smul.addr %s349, 2
        %s351 = smul.addr %s350, 8
        %s352 = scalar_lea.vmem %s3, %s351
        %s353 = smul.u32 2, %s14
        %s354 = smul.u32 2, %s14
        %s355 = smul.u32 2, %s14
        %s356 = smul.u32 2, %s14
        %p357 = scmp.lt.s32.totalorder %s356, 3
        %s358 = scalar_select %p357, %s356, 3
        %s359 = smul.addr %s358, 2
        %s360 = smul.addr %s359, 8
        %s361 = scalar_lea.vmem %s3, %s360
        %s362 = smul.u32 2, %s14
        %v363 = vld [vmem:[%s309] sm:$0xff]
        %v364 = vld [vmem:[%s309 + $0x8] sm:$0xff]
        %v365 = vld [vmem:[%s309 + $0x10] sm:$0xff]
        %v366 = vld [vmem:[%s309 + $0x18] sm:$0xff]
        %v367 = vld [vmem:[%s316] sm:$0xff]
        %v368 = vld [vmem:[%s316 + $0x8] sm:$0xff]
        %v369 = vld [vmem:[%s316 + $0x10] sm:$0xff]
        %v370 = vld [vmem:[%s316 + $0x18] sm:$0xff]
        %v371 = vld [vmem:[%s323] sm:$0xff]
        %v372 = vld [vmem:[%s323 + $0x8] sm:$0xff]
        %v373 = vld [vmem:[%s323 + $0x10] sm:$0xff]
        %v374 = vld [vmem:[%s323 + $0x18] sm:$0xff]
        %v375 = vmul.f32 %v363, 0.5
        %v376 = vmul.f32 %v364, 0.5
        %v377 = vmul.f32 %v365, 0.5
        %v378 = vmul.f32 %v366, 0.5
        %v379 = vmul.f32 %v367, 0.5
        %v380 = vmul.f32 %v368, 0.5
        %v381 = vmul.f32 %v369, 0.5
        %v382 = vmul.f32 %v370, 0.5
        %383 = vxpose.xlu0.b32.start [1/16] %v375, 128
        %384 = vxpose.xlu0.b32.cont [2/16] %v376, 128
        %385 = vxpose.xlu0.b32.cont [3/16] 0.0, 128
        %386 = vxpose.xlu0.b32.cont [4/16] 0.0, 128
        %387 = vxpose.xlu0.b32.cont [5/16] 0.0, 128
        %388 = vxpose.xlu0.b32.cont [6/16] 0.0, 128
        %389 = vxpose.xlu0.b32.cont [7/16] 0.0, 128
        %390 = vxpose.xlu0.b32.cont [8/16] 0.0, 128
        %391 = vxpose.xlu0.b32.cont [9/16] 0.0, 128
        %392 = vxpose.xlu0.b32.cont [10/16] 0.0, 128
        %393 = vxpose.xlu0.b32.cont [11/16] 0.0, 128
        %394 = vxpose.xlu0.b32.cont [12/16] 0.0, 128
        %395 = vxpose.xlu0.b32.cont [13/16] 0.0, 128
        %396 = vxpose.xlu0.b32.cont [14/16] 0.0, 128
        %397 = vxpose.xlu0.b32.cont [15/16] 0.0, 128
        %398 = vxpose.xlu0.b32.end [16/16] 0.0, 128
        %v399 = vpop.trf.xlu0
        %v400 = vpop.trf.xlu0
        %v401 = vpop.trf.xlu0
        %v402 = vpop.trf.xlu0
        %v403 = vpop.trf.xlu0
        %v404 = vpop.trf.xlu0
        %v405 = vpop.trf.xlu0
        %v406 = vpop.trf.xlu0
        %v407 = vpop.trf.xlu0
        %v408 = vpop.trf.xlu0
        %v409 = vpop.trf.xlu0
        %v410 = vpop.trf.xlu0
        %v411 = vpop.trf.xlu0
        %v412 = vpop.trf.xlu0
        %v413 = vpop.trf.xlu0
        %v414 = vpop.trf.xlu0
        %vm415 = vcmask 130048
        %v417 = vsel %vm415, %v399, 0
        %419 = vmatprep.subr.mxu0 0.0
        %420 = vmatpush1.msra.mxu0 %v379
        %421 = vmatprep.subr.mxu0 0.0
        %422 = vmatpush1.msra.mxu0 %v380
        %423 = vmatprep.subr.mxu0 0.0
        %424 = vmatpush1.msra.mxu0 0.0
        %425 = vmatprep.subr.mxu0 0.0
        %426 = vmatpush1.msra.mxu0 0.0
        %427 = vmatprep.subr.mxu0 0.0
        %428 = vmatpush1.msra.mxu0 0.0
        %429 = vmatprep.subr.mxu0 0.0
        %430 = vmatpush1.msra.mxu0 0.0
        %431 = vmatprep.subr.mxu0 0.0
        %432 = vmatpush1.msra.mxu0 0.0
        %433 = vmatprep.subr.mxu0 0.0
        %434 = vmatpush1.msra.mxu0 0.0
        %435 = vmatprep.subr.mxu0 0.0
        %436 = vmatpush1.msra.mxu0 0.0
        %437 = vmatprep.subr.mxu0 0.0
        %438 = vmatpush1.msra.mxu0 0.0
        %439 = vmatprep.subr.mxu0 0.0
        %440 = vmatpush1.msra.mxu0 0.0
        %441 = vmatprep.subr.mxu0 0.0
        %442 = vmatpush1.msra.mxu0 0.0
        %443 = vmatprep.subr.mxu0 0.0
        %444 = vmatpush1.msra.mxu0 0.0
        %445 = vmatprep.subr.mxu0 0.0
        %446 = vmatpush1.msra.mxu0 0.0
        %447 = vmatprep.subr.mxu0 0.0
        %448 = vmatpush1.msra.mxu0 0.0
        %449 = vmatprep.subr.mxu0 0.0
        %450 = vmatpush1.msra.mxu0 0.0
        %451 = vmatprep.subr.mxu0 0.0
        %452 = vmatpush1.msra.mxu0 0.0
        %453 = vmatprep.subr.mxu0 0.0
        %454 = vmatpush1.msra.mxu0 0.0
        %455 = vmatprep.subr.mxu0 0.0
        %456 = vmatpush1.msra.mxu0 0.0
        %457 = vmatprep.subr.mxu0 0.0
        %458 = vmatpush1.msra.mxu0 0.0
        %459 = vmatprep.subr.mxu0 0.0
        %460 = vmatpush1.msra.mxu0 0.0
        %461 = vmatprep.subr.mxu0 0.0
        %462 = vmatpush1.msra.mxu0 0.0
        %463 = vmatprep.subr.mxu0 0.0
        %464 = vmatpush1.msra.mxu0 0.0
        %465 = vmatprep.subr.mxu0 0.0
        %466 = vmatpush1.msra.mxu0 0.0
        %467 = vmatprep.subr.mxu0 0.0
        %468 = vmatpush1.msra.mxu0 0.0
        %469 = vmatprep.subr.mxu0 0.0
        %470 = vmatpush1.msra.mxu0 0.0
        %471 = vmatprep.subr.mxu0 0.0
        %472 = vmatpush1.msra.mxu0 0.0
        %473 = vmatprep.subr.mxu0 0.0
        %474 = vmatpush1.msra.mxu0 0.0
        %475 = vmatprep.subr.mxu0 0.0
        %476 = vmatpush1.msra.mxu0 0.0
        %477 = vmatprep.subr.mxu0 0.0
        %478 = vmatpush1.msra.mxu0 0.0
        %479 = vmatprep.subr.mxu0 0.0
        %480 = vmatpush1.msra.mxu0 0.0
        %481 = vmatprep.subr.mxu0 0.0
        %482 = vmatpush1.msra.mxu0 0.0
        %483 = vmatprep.mubr.f32.mxu0 0.0
        %484 = vmatmul.mubr.f32.gmra.mrb[0].mxu0 %v417
        %v485 = vpop.f32.mrb[0].mxu0
        %v486 = vadd.f32 0.0, %v485
        %v487 = vpop.f32.mrb[0].mxu0
        %488 = vdwg.mxu0
        %489 = vxpose.xlu0.b32.start [1/16] %v377, 128
        %490 = vxpose.xlu0.b32.cont [2/16] %v378, 128
        %491 = vxpose.xlu0.b32.cont [3/16] 0.0, 128
        %492 = vxpose.xlu0.b32.cont [4/16] 0.0, 128
        %493 = vxpose.xlu0.b32.cont [5/16] 0.0, 128
        %494 = vxpose.xlu0.b32.cont [6/16] 0.0, 128
        %495 = vxpose.xlu0.b32.cont [7/16] 0.0, 128
        %496 = vxpose.xlu0.b32.cont [8/16] 0.0, 128
        %497 = vxpose.xlu0.b32.cont [9/16] 0.0, 128
        %498 = vxpose.xlu0.b32.cont [10/16] 0.0, 128
        %499 = vxpose.xlu0.b32.cont [11/16] 0.0, 128
        %500 = vxpose.xlu0.b32.cont [12/16] 0.0, 128
        %501 = vxpose.xlu0.b32.cont [13/16] 0.0, 128
        %502 = vxpose.xlu0.b32.cont [14/16] 0.0, 128
        %503 = vxpose.xlu0.b32.cont [15/16] 0.0, 128
        %504 = vxpose.xlu0.b32.end [16/16] 0.0, 128
        %v505 = vpop.trf.xlu0
        %v506 = vpop.trf.xlu0
        %v507 = vpop.trf.xlu0
        %v508 = vpop.trf.xlu0
        %v509 = vpop.trf.xlu0
        %v510 = vpop.trf.xlu0
        %v511 = vpop.trf.xlu0
        %v512 = vpop.trf.xlu0
        %v513 = vpop.trf.xlu0
        %v514 = vpop.trf.xlu0
        %v515 = vpop.trf.xlu0
        %v516 = vpop.trf.xlu0
        %v517 = vpop.trf.xlu0
        %v518 = vpop.trf.xlu0
        %v519 = vpop.trf.xlu0
        %v520 = vpop.trf.xlu0
        %v522 = vsel %vm415, %v505, 0
        %524 = vmatprep.subr.mxu0 0.0
        %525 = vmatpush1.msra.mxu0 %v381
        %526 = vmatprep.subr.mxu0 0.0
        %527 = vmatpush1.msra.mxu0 %v382
        %528 = vmatprep.subr.mxu0 0.0
        %529 = vmatpush1.msra.mxu0 0.0
        %530 = vmatprep.subr.mxu0 0.0
        %531 = vmatpush1.msra.mxu0 0.0
        %532 = vmatprep.subr.mxu0 0.0
        %533 = vmatpush1.msra.mxu0 0.0
        %534 = vmatprep.subr.mxu0 0.0
        %535 = vmatpush1.msra.mxu0 0.0
        %536 = vmatprep.subr.mxu0 0.0
        %537 = vmatpush1.msra.mxu0 0.0
        %538 = vmatprep.subr.mxu0 0.0
        %539 = vmatpush1.msra.mxu0 0.0
        %540 = vmatprep.subr.mxu0 0.0
        %541 = vmatpush1.msra.mxu0 0.0
        %542 = vmatprep.subr.mxu0 0.0
        %543 = vmatpush1.msra.mxu0 0.0
        %544 = vmatprep.subr.mxu0 0.0
        %545 = vmatpush1.msra.mxu0 0.0
        %546 = vmatprep.subr.mxu0 0.0
        %547 = vmatpush1.msra.mxu0 0.0
        %548 = vmatprep.subr.mxu0 0.0
        %549 = vmatpush1.msra.mxu0 0.0
        %550 = vmatprep.subr.mxu0 0.0
        %551 = vmatpush1.msra.mxu0 0.0
        %552 = vmatprep.subr.mxu0 0.0
        %553 = vmatpush1.msra.mxu0 0.0
        %554 = vmatprep.subr.mxu0 0.0
        %555 = vmatpush1.msra.mxu0 0.0
        %556 = vmatprep.subr.mxu0 0.0
        %557 = vmatpush1.msra.mxu0 0.0
        %558 = vmatprep.subr.mxu0 0.0
        %559 = vmatpush1.msra.mxu0 0.0
        %560 = vmatprep.subr.mxu0 0.0
        %561 = vmatpush1.msra.mxu0 0.0
        %562 = vmatprep.subr.mxu0 0.0
        %563 = vmatpush1.msra.mxu0 0.0
        %564 = vmatprep.subr.mxu0 0.0
        %565 = vmatpush1.msra.mxu0 0.0
        %566 = vmatprep.subr.mxu0 0.0
        %567 = vmatpush1.msra.mxu0 0.0
        %568 = vmatprep.subr.mxu0 0.0
        %569 = vmatpush1.msra.mxu0 0.0
        %570 = vmatprep.subr.mxu0 0.0
        %571 = vmatpush1.msra.mxu0 0.0
        %572 = vmatprep.subr.mxu0 0.0
        %573 = vmatpush1.msra.mxu0 0.0
        %574 = vmatprep.subr.mxu0 0.0
        %575 = vmatpush1.msra.mxu0 0.0
        %576 = vmatprep.subr.mxu0 0.0
        %577 = vmatpush1.msra.mxu0 0.0
        %578 = vmatprep.subr.mxu0 0.0
        %579 = vmatpush1.msra.mxu0 0.0
        %580 = vmatprep.subr.mxu0 0.0
        %581 = vmatpush1.msra.mxu0 0.0
        %582 = vmatprep.subr.mxu0 0.0
        %583 = vmatpush1.msra.mxu0 0.0
        %584 = vmatprep.subr.mxu0 0.0
        %585 = vmatpush1.msra.mxu0 0.0
        %586 = vmatprep.subr.mxu0 0.0
        %587 = vmatpush1.msra.mxu0 0.0
        %588 = vmatprep.mubr.f32.mxu0 0.0
        %589 = vmatmul.mubr.f32.gmra.mrb[0].mxu0 %v522
        %v590 = vpop.f32.mrb[0].mxu0
        %v591 = vadd.f32 0.0, %v590
        %v592 = vpop.f32.mrb[0].mxu0
        %593 = vdwg.mxu0
        %vm594 = vcmask 64512
        %v595 = vsel %vm594, %v486, -inf
        %596 = vmax.xlane.f32.xlu0 %v595
        %v597 = vpop.xlane.xlu0 %596
        %v598 = vsel %vm594, %v591, -inf
        %599 = vmax.xlane.f32.xlu0 %v598
        %v600 = vpop.xlane.xlu0 %599
        %v601 = vsub.f32 %v486, %v597
        %v602 = vsub.f32 %v591, %v600
        %v603 = vmul.f32 %v601, 1.442695
        %v604 = vpow.pop %v603
        %v605 = vmul.f32 %v602, 1.442695
        %v606 = vpow.pop %v605
        %v607 = vsel %vm594, %v604, 0.0
        %608 = vadd.xlane.f32.xlu0 %v607
        %v609 = vpop.xlane.xlu0 %608
        %v610 = vsel %vm594, %v606, 0.0
        %611 = vadd.xlane.f32.xlu0 %v610
        %v612 = vpop.xlane.xlu0 %611
        %v613 = vrcp.pop %v609
        %v614 = vmul.f32 1.0, %v613
        %v615 = vrcp.pop %v612
        %v616 = vmul.f32 1.0, %v615
        %v617 = vmul.f32 %v604, %v614
        %v618 = vmul.f32 %v606, %v616
        %v620 = vsel %vm594, %v371, 0
        %v623 = vsel %vm594, %v372, 0
        %v626 = vsel %vm594, %v617, 0
        %628 = vmatprep.subr.mxu0 0.0
        %629 = vmatpush1.xpose.msra.mxu0 %v626
        %630 = vmatprep.subr.mxu0 0.0
        %631 = vmatpush1.xpose.msra.mxu0 0.0
        %632 = vmatprep.subr.mxu0 0.0
        %633 = vmatpush1.xpose.msra.mxu0 0.0
        %634 = vmatprep.subr.mxu0 0.0
        %635 = vmatpush1.xpose.msra.mxu0 0.0
        %636 = vmatprep.subr.mxu0 0.0
        %637 = vmatpush1.xpose.msra.mxu0 0.0
        %638 = vmatprep.subr.mxu0 0.0
        %639 = vmatpush1.xpose.msra.mxu0 0.0
        %640 = vmatprep.subr.mxu0 0.0
        %641 = vmatpush1.xpose.msra.mxu0 0.0
        %642 = vmatprep.subr.mxu0 0.0
        %643 = vmatpush1.xpose.msra.mxu0 0.0
        %644 = vmatprep.subr.mxu0 0.0
        %645 = vmatpush1.xpose.msra.mxu0 0.0
        %646 = vmatprep.subr.mxu0 0.0
        %647 = vmatpush1.xpose.msra.mxu0 0.0
        %648 = vmatprep.subr.mxu0 0.0
        %649 = vmatpush1.xpose.msra.mxu0 0.0
        %650 = vmatprep.subr.mxu0 0.0
        %651 = vmatpush1.xpose.msra.mxu0 0.0
        %652 = vmatprep.subr.mxu0 0.0
        %653 = vmatpush1.xpose.msra.mxu0 0.0
        %654 = vmatprep.subr.mxu0 0.0
        %655 = vmatpush1.xpose.msra.mxu0 0.0
        %656 = vmatprep.subr.mxu0 0.0
        %657 = vmatpush1.xpose.msra.mxu0 0.0
        %658 = vmatprep.subr.mxu0 0.0
        %659 = vmatpush1.xpose.msra.mxu0 0.0
        %660 = vmatprep.subr.mxu0 0.0
        %661 = vmatpush1.xpose.msra.mxu0 0.0
        %662 = vmatprep.subr.mxu0 0.0
        %663 = vmatpush1.xpose.msra.mxu0 0.0
        %664 = vmatprep.subr.mxu0 0.0
        %665 = vmatpush1.xpose.msra.mxu0 0.0
        %666 = vmatprep.subr.mxu0 0.0
        %667 = vmatpush1.xpose.msra.mxu0 0.0
        %668 = vmatprep.subr.mxu0 0.0
        %669 = vmatpush1.xpose.msra.mxu0 0.0
        %670 = vmatprep.subr.mxu0 0.0
        %671 = vmatpush1.xpose.msra.mxu0 0.0
        %672 = vmatprep.subr.mxu0 0.0
        %673 = vmatpush1.xpose.msra.mxu0 0.0
        %674 = vmatprep.subr.mxu0 0.0
        %675 = vmatpush1.xpose.msra.mxu0 0.0
        %676 = vmatprep.subr.mxu0 0.0
        %677 = vmatpush1.xpose.msra.mxu0 0.0
        %678 = vmatprep.subr.mxu0 0.0
        %679 = vmatpush1.xpose.msra.mxu0 0.0
        %680 = vmatprep.subr.mxu0 0.0
        %681 = vmatpush1.xpose.msra.mxu0 0.0
        %682 = vmatprep.subr.mxu0 0.0
        %683 = vmatpush1.xpose.msra.mxu0 0.0
        %684 = vmatprep.subr.mxu0 0.0
        %685 = vmatpush1.xpose.msra.mxu0 0.0
        %686 = vmatprep.subr.mxu0 0.0
        %687 = vmatpush1.xpose.msra.mxu0 0.0
        %688 = vmatprep.subr.mxu0 0.0
        %689 = vmatpush1.xpose.msra.mxu0 0.0
        %690 = vmatprep.subr.mxu0 0.0
        %691 = vmatpush1.xpose.msra.mxu0 0.0
        %692 = vmatprep.mubr.f32.mxu0 0.0
        %693 = vmatmul.mubr.f32.gmra.mrb[0].mxu0 %v620
        %v694 = vpop.f32.mrb[0].mxu0
        %v695 = vadd.f32 0.0, %v694
        %v696 = vpop.f32.mrb[0].mxu0
        %697 = vmatprep.mubr.f32.mxu0 0.0
        %698 = vmatmul.mubr.f32.gmra.mrb[0].mxu0 %v623
        %v699 = vpop.f32.mrb[0].mxu0
        %v700 = vadd.f32 0.0, %v699
        %v701 = vpop.f32.mrb[0].mxu0
        %702 = vdwg.mxu0
        %v704 = vsel %vm594, %v373, 0
        %v707 = vsel %vm594, %v374, 0
        %v710 = vsel %vm594, %v618, 0
        %712 = vmatprep.subr.mxu0 0.0
        %713 = vmatpush1.xpose.msra.mxu0 %v710
        %714 = vmatprep.subr.mxu0 0.0
        %715 = vmatpush1.xpose.msra.mxu0 0.0
        %716 = vmatprep.subr.mxu0 0.0
        %717 = vmatpush1.xpose.msra.mxu0 0.0
        %718 = vmatprep.subr.mxu0 0.0
        %719 = vmatpush1.xpose.msra.mxu0 0.0
        %720 = vmatprep.subr.mxu0 0.0
        %721 = vmatpush1.xpose.msra.mxu0 0.0
        %722 = vmatprep.subr.mxu0 0.0
        %723 = vmatpush1.xpose.msra.mxu0 0.0
        %724 = vmatprep.subr.mxu0 0.0
        %725 = vmatpush1.xpose.msra.mxu0 0.0
        %726 = vmatprep.subr.mxu0 0.0
        %727 = vmatpush1.xpose.msra.mxu0 0.0
        %728 = vmatprep.subr.mxu0 0.0
        %729 = vmatpush1.xpose.msra.mxu0 0.0
        %730 = vmatprep.subr.mxu0 0.0
        %731 = vmatpush1.xpose.msra.mxu0 0.0
        %732 = vmatprep.subr.mxu0 0.0
        %733 = vmatpush1.xpose.msra.mxu0 0.0
        %734 = vmatprep.subr.mxu0 0.0
        %735 = vmatpush1.xpose.msra.mxu0 0.0
        %736 = vmatprep.subr.mxu0 0.0
        %737 = vmatpush1.xpose.msra.mxu0 0.0
        %738 = vmatprep.subr.mxu0 0.0
        %739 = vmatpush1.xpose.msra.mxu0 0.0
        %740 = vmatprep.subr.mxu0 0.0
        %741 = vmatpush1.xpose.msra.mxu0 0.0
        %742 = vmatprep.subr.mxu0 0.0
        %743 = vmatpush1.xpose.msra.mxu0 0.0
        %744 = vmatprep.subr.mxu0 0.0
        %745 = vmatpush1.xpose.msra.mxu0 0.0
        %746 = vmatprep.subr.mxu0 0.0
        %747 = vmatpush1.xpose.msra.mxu0 0.0
        %748 = vmatprep.subr.mxu0 0.0
        %749 = vmatpush1.xpose.msra.mxu0 0.0
        %750 = vmatprep.subr.mxu0 0.0
        %751 = vmatpush1.xpose.msra.mxu0 0.0
        %752 = vmatprep.subr.mxu0 0.0
        %753 = vmatpush1.xpose.msra.mxu0 0.0
        %754 = vmatprep.subr.mxu0 0.0
        %755 = vmatpush1.xpose.msra.mxu0 0.0
        %756 = vmatprep.subr.mxu0 0.0
        %757 = vmatpush1.xpose.msra.mxu0 0.0
        %758 = vmatprep.subr.mxu0 0.0
        %759 = vmatpush1.xpose.msra.mxu0 0.0
        %760 = vmatprep.subr.mxu0 0.0
        %761 = vmatpush1.xpose.msra.mxu0 0.0
        %762 = vmatprep.subr.mxu0 0.0
        %763 = vmatpush1.xpose.msra.mxu0 0.0
        %764 = vmatprep.subr.mxu0 0.0
        %765 = vmatpush1.xpose.msra.mxu0 0.0
        %766 = vmatprep.subr.mxu0 0.0
        %767 = vmatpush1.xpose.msra.mxu0 0.0
        %768 = vmatprep.subr.mxu0 0.0
        %769 = vmatpush1.xpose.msra.mxu0 0.0
        %770 = vmatprep.subr.mxu0 0.0
        %771 = vmatpush1.xpose.msra.mxu0 0.0
        %772 = vmatprep.subr.mxu0 0.0
        %773 = vmatpush1.xpose.msra.mxu0 0.0
        %774 = vmatprep.subr.mxu0 0.0
        %775 = vmatpush1.xpose.msra.mxu0 0.0
        %776 = vmatprep.mubr.f32.mxu0 0.0
        %777 = vmatmul.mubr.f32.gmra.mrb[0].mxu0 %v704
        %v778 = vpop.f32.mrb[0].mxu0
        %v779 = vadd.f32 0.0, %v778
        %v780 = vpop.f32.mrb[0].mxu0
        %781 = vmatprep.mubr.f32.mxu0 0.0
        %782 = vmatmul.mubr.f32.gmra.mrb[0].mxu0 %v707
        %v783 = vpop.f32.mrb[0].mxu0
        %v784 = vadd.f32 0.0, %v783
        %v785 = vpop.f32.mrb[0].mxu0
        %786 = vdwg.mxu0
        %787 = vst.msk [vmem:[%s361] sm:$0xff] %vm594, %v695
        %788 = vst.msk [vmem:[%s361 + $0x8] sm:$0xff] %vm594, %v700
        %789 = vst.msk [vmem:[%s361 + $0x10] sm:$0xff] %vm594, %v779
        %790 = vst.msk [vmem:[%s361 + $0x18] sm:$0xff] %vm594, %v784
        %s791 = smul.u32 2, %s14
        %p792 = scmp.lt.s32.totalorder %s791, 3
        %s793 = scalar_select %p792, %s791, 3
        %s794 = smul.addr %s793, 2
        %s795 = smul.addr %s794, 8
        %s796 = scalar_lea.vmem %s3, %s795
        // Predicated region
        $region147: #{tpu_custom_call.1} parent=133 // pred_check
          %p797 = pneg %p110
        $region148: #{tpu_custom_call.1} parent=133 // pred_check_branch
          %799 = sbr.rel (%p797) target = $region150
        $region149: #{tpu_custom_call.1} parent=133 // pred_region
          %s800 = smul.u32 2, %s14
        $region150: #{tpu_custom_call.1} parent=133 // pred_fallthru
          _
      $region134: #{tpu_custom_call.1} parent=5 // pred_fallthru
        _
      %p801 = scmp.le.s32.totalorder 2, %s9
      // Predicated region
      $region151: #{tpu_custom_call.1} parent=5 // pred_check
        %p802 = pneg %p801
      $region152: #{tpu_custom_call.1} parent=5 // pred_check_branch
        %804 = sbr.rel (%p802) target = $region154
      $region153: #{tpu_custom_call.1} parent=5 // pred_region
        %s805 = ssub.s32 %s9, 2
        // Predicated region
        $region155: #{tpu_custom_call.1} parent=153 // pred_check
          %p806 = pneg %p116
        $region156: #{tpu_custom_call.1} parent=153 // pred_check_branch
          %808 = sbr.rel (%p806) target = $region158
        $region157: #{tpu_custom_call.1} parent=153 // pred_region
          %s809 = smul.u32 2, %s15
          %p810 = scmp.lt.s32.totalorder %s809, 3
          %s811 = scalar_select %p810, %s809, 3
          %s812 = smul.addr %s811, 2
          %s813 = smul.addr %s812, 8
          %s814 = scalar_lea.vmem %s3, %s813
        $region158: #{tpu_custom_call.1} parent=153 // pred_fallthru
          _
      $region154: #{tpu_custom_call.1} parent=5 // pred_fallthru
        _
    $region6: #{tpu_custom_call.1} parent=1 // loop_footer
      %s13 = sadd.s32 1, %s9
    $region7: #{tpu_custom_call.1} parent=1 // loop_footer_branch
      %8 = sbr.rel target = $region3
    $region8: #{tpu_custom_call.1} parent=1 // loop_exit
      _

</llo_original>
